<compile_context>
chip_gen: v7x
topology: tpu7x:2x2x1
jax: 0.10.0
libtpu: 0.0.40
codegen_flags: <defaults>
</compile_context>

<pallas_src>
import math
import functools

import jax
import jax.numpy as jnp
from jax.experimental import pallas as pl
from jax.experimental.pallas import tpu as pltpu


# ---------------------------------------------------------------------------
# Kernel 1: fused semi-dual OT plan -> categorical sampling logits
#   s[j,k]   = bias[k] - C[j,k]/eps          (bias = v/eps + log px, pre-folded)
#   L[j,b]   = s_g[j,b] - logsumexp_k s[j,k] (s_g = gathered columns idx, tiny, from wrapper)
# ---------------------------------------------------------------------------
def ot_logits_kernel(c_ref, bias_ref, sg_ref, out_ref, *, inv_eps):
    s = bias_ref[...] - c_ref[...] * inv_eps                 # (tile, N_data)
    m = jnp.max(s, axis=-1, keepdims=True)                   # (tile, 1)
    lse = m + jnp.log(jnp.sum(jnp.exp(s - m), axis=-1, keepdims=True))
    out_ref[...] = sg_ref[...] - lse                         # (tile, B) lane-dense logits


def _pick_row_tile(n_z, n_data, b, budget_bytes=36 * 1024 * 1024):
    """Largest row tile (divisor of n_z, multiple of 8) whose double-buffered
    streams fit a VMEM budget that is also valid on v7x (64 MiB physical)."""
    if n_z <= 8 or (n_z % 8) != 0:
        return n_z  # small / odd row count: single full block
    per_row_bytes = 2 * 4 * (n_data + 2 * b)   # double-buffered C + s_g + out, f32
    rows = budget_bytes // max(1, per_row_bytes)
    rows = max(8, min(int(rows), n_z, 1024))
    rows = (rows // 8) * 8
    while n_z % rows != 0:
        rows -= 8
    return max(rows, 8)


def ot_sampling_logits(C, v, px, idx, eps):
    """Returns logits of shape (N_z, B); categorical over axis 0 == z samples."""
    n_z, n_data = C.shape
    b = int(idx.shape[0])
    inv_eps = 1.0 / float(eps)

    C = C.astype(jnp.float32)
    bias = (v.astype(jnp.float32) * inv_eps
            + jnp.log(px.astype(jnp.float32))).reshape(1, n_data)      # (1, N_data)
    # Gathered-column scores: tiny (N_z x B), computed by XLA so the kernel stays exact f32.
    s_g = bias[0, idx][None, :] - C[:, idx] * inv_eps                  # (N_z, B)

    tile = _pick_row_tile(n_z, n_data, b)
    kernel = functools.partial(ot_logits_kernel, inv_eps=inv_eps)
    return pl.pallas_call(
        kernel,
        out_shape=jax.ShapeDtypeStruct((n_z, b), jnp.float32),
        grid=(n_z // tile,),
        in_specs=[
            pl.BlockSpec((tile, n_data), lambda i: (i, 0)),   # C rows (streamed)
            pl.BlockSpec((1, n_data), lambda i: (0, 0)),      # folded bias row (resident)
            pl.BlockSpec((tile, b), lambda i: (i, 0)),        # gathered scores
        ],
        out_specs=pl.BlockSpec((tile, b), lambda i: (i, 0)),
        compiler_params=pltpu.CompilerParams(
            dimension_semantics=("parallel",),
            vmem_limit_bytes=48 * 1024 * 1024,
        ),
        cost_estimate=pl.CostEstimate(
            flops=5 * n_z * n_data + 2 * n_z * b,
            transcendentals=n_z * n_data + n_z,
            bytes_accessed=4 * (n_z * n_data + n_data + 2 * n_z * b),
        ),
    )(C, bias, s_g)


# ---------------------------------------------------------------------------
# Kernel 2: MLP decoder + Gaussian negative log-likelihood (batch tiled)
#   mu  = W3 @ tanh(W2 @ tanh(W1 @ z + b1) + b2) + b3
#   C_i = 0.5 * sum_d (x_id - mu_id)^2 + 0.5 * D * log(2*pi)
# Output is lane-dense: (1, B), one NLL per lane.
# ---------------------------------------------------------------------------
def decoder_nll_kernel(z_ref, x_ref, w1_ref, b1_ref, w2_ref, b2_ref, w3_ref, b3_ref,
                       o_ref, *, d_in):
    h1 = jnp.tanh(jnp.dot(z_ref[...], w1_ref[...],
                          preferred_element_type=jnp.float32) + b1_ref[...])
    h2 = jnp.tanh(jnp.dot(h1, w2_ref[...],
                          preferred_element_type=jnp.float32) + b2_ref[...])
    mu = jnp.dot(h2, w3_ref[...], preferred_element_type=jnp.float32) + b3_ref[...]
    diff = x_ref[...] - mu
    const = 0.5 * float(d_in) * math.log(2.0 * math.pi)
    nll = 0.5 * jnp.sum(diff * diff, axis=-1) + const        # (tile_b,)
    o_ref[...] = nll[None, :]                                # lane-dense (1, tile_b)


def _pick_batch_tile(b):
    for t in (512, 256, 128):
        if b % t == 0:
            return t
    return b


def decoder_nll(z_sample, x, params):
    b, latent = z_sample.shape
    _, d_in = x.shape
    w1, b1, w2, b2, w3, b3 = params
    hidden = w1.shape[1]
    tb = _pick_batch_tile(b)

    const_spec = lambda shp: pl.BlockSpec(shp, lambda i: (0, 0))   # resident weights
    kernel = functools.partial(decoder_nll_kernel, d_in=d_in)

    flops = 2 * b * (latent * hidden + hidden * hidden + hidden * d_in) + 4 * b * d_in
    bytes_accessed = 4 * (b * latent + b * d_in + latent * hidden + hidden * hidden
                          + hidden * d_in + 2 * hidden + d_in + b)

    nll = pl.pallas_call(
        kernel,
        out_shape=jax.ShapeDtypeStruct((1, b), jnp.float32),
        grid=(b // tb,),
        in_specs=[
            pl.BlockSpec((tb, latent), lambda i: (i, 0)),   # z_sample (streamed per tile)
            pl.BlockSpec((tb, d_in), lambda i: (i, 0)),     # x        (streamed per tile)
            const_spec((latent, hidden)),                   # w1
            const_spec((1, hidden)),                        # b1
            const_spec((hidden, hidden)),                   # w2
            const_spec((1, hidden)),                        # b2
            const_spec((hidden, d_in)),                     # w3
            const_spec((1, d_in)),                          # b3
        ],
        out_specs=pl.BlockSpec((1, tb), lambda i: (0, i)),
        compiler_params=pltpu.CompilerParams(
            dimension_semantics=("parallel",),
            vmem_limit_bytes=48 * 1024 * 1024,
        ),
        cost_estimate=pl.CostEstimate(
            flops=flops,
            transcendentals=2 * b * hidden,
            bytes_accessed=bytes_accessed,
        ),
    )(z_sample.astype(jnp.float32), x.astype(jnp.float32), w1, b1, w2, b2, w3, b3)
    return nll[0]


# ---------------------------------------------------------------------------
# Forward pass wrapper (mirrors CoopCommSemiDual.forward)
# ---------------------------------------------------------------------------
def coop_comm_semidual_forward(params, px, v, epsilon, x, idx, z, C, sample_key):
    # Fused: otsolver(px, C, eps, v).t()[idx] + log  ->  logits (N_z, B)
    logits = ot_sampling_logits(C, v, px, idx, epsilon)
    # categ = Categorical(W_xz); s = categ.sample()   (categorical over z axis)
    s = jax.random.categorical(sample_key, logits, axis=0)   # (B,)
    # z_sample = z[s]
    z_sample = z[s]                                          # (B, L)
    # dist = c_function(z_sample); C_ = -dist.log_prob(x)
    C_ = decoder_nll(z_sample, x, params)                    # (B,)
    return C_, z_sample


# ---------------------------------------------------------------------------
# Deterministic parameter init for the synthetic MLPDecoder
# ---------------------------------------------------------------------------
def init_decoder_params(key, latent_dim, hidden, d_in):
    k1, k2, k3 = jax.random.split(key, 3)
    scale = 0.1
    w1 = scale * jax.random.normal(k1, (latent_dim, hidden), jnp.float32)
    b1 = jnp.zeros((1, hidden), jnp.float32)
    w2 = scale * jax.random.normal(k2, (hidden, hidden), jnp.float32)
    b2 = jnp.zeros((1, hidden), jnp.float32)
    w3 = scale * jax.random.normal(k3, (hidden, d_in), jnp.float32)
    b3 = jnp.zeros((1, d_in), jnp.float32)
    return (w1, b1, w2, b2, w3, b3)


if __name__ == "__main__":
    # Small shapes consistent with the MLPDecoder branch of the module.
    B, D_IN, LATENT, HIDDEN = 8, 32, 8, 64
    N_Z, N_DATA = 16, 16
    EPSILON = 0.5

    root = jax.random.PRNGKey(0)
    kx, kz, kC, kv, kp, ks = jax.random.split(root, 6)

    x = jax.random.normal(kx, (B, D_IN), jnp.float32)
    z = jax.random.normal(kz, (N_Z, LATENT), jnp.float32)
    C = jnp.abs(jax.random.normal(kC, (N_Z, N_DATA), jnp.float32))   # cost (= C_all.t())
    v = 0.1 * jax.random.normal(kv, (N_DATA,), jnp.float32)          # OT dual (self.v)
    px = jnp.ones((N_DATA,), jnp.float32) / N_DATA                   # self.px
    idx = jnp.arange(B, dtype=jnp.int32) % N_DATA                    # minibatch data indices

    params = init_decoder_params(kp, LATENT, HIDDEN, D_IN)

    # --- run forward ---
    C_, z_sample = coop_comm_semidual_forward(params, px, v, EPSILON, x, idx, z, C, ks)
    jax.block_until_ready((C_, z_sample))

    assert C_.shape == (B,)
    assert z_sample.shape == (B, LATENT)
    assert bool(jnp.all(jnp.isfinite(C_)))

    # --- lightweight correctness checks against pure-JAX references ---
    # Kernel 1: logits match log of the (gathered, column-normalized) transport plan
    # up to a per-column additive constant (which the categorical ignores).
    logits = ot_sampling_logits(C, v, px, idx, EPSILON)
    bias_ref = v / EPSILON + jnp.log(px)
    s_full = bias_ref[None, :] - C * (1.0 / EPSILON)
    m_ref = jnp.max(s_full, axis=1, keepdims=True)
    lse_ref = m_ref + jnp.log(jnp.sum(jnp.exp(s_full - m_ref), axis=1, keepdims=True))
    ref_logits = s_full[:, idx] - lse_ref
    assert bool(jnp.allclose(logits, ref_logits, rtol=1e-4, atol=1e-4))

    # Kernel 2: decoder NLL matches the pure-JAX MLP + Gaussian NLL (loose tol: MXU matmul).
    w1, b1, w2, b2, w3, b3 = params
    zs = z_sample.astype(jnp.float32)
    h1 = jnp.tanh(zs @ w1 + b1)
    h2 = jnp.tanh(h1 @ w2 + b2)
    mu = h2 @ w3 + b3
    ref_nll = 0.5 * jnp.sum((x - mu) ** 2, axis=-1) + 0.5 * D_IN * math.log(2.0 * math.pi)
    assert bool(jnp.allclose(C_, ref_nll, rtol=2e-2, atol=2e-2))

    print("KERNEL_OK")
</pallas_src>

<mosaic_0001>
module attributes {stable_mosaic.version = 11 : i64} {
  func.func @ot_logits_kernel(%arg0: i32, %arg1: memref<16x16xf32, #tpu.memory_space<vmem>>, %arg2: memref<1x16xf32, #tpu.memory_space<vmem>>, %arg3: memref<16x8xf32, #tpu.memory_space<vmem>>, %arg4: memref<16x8xf32, #tpu.memory_space<vmem>>) attributes {dimension_semantics = [#tpu.dimension_semantics<parallel>], iteration_bounds = array<i64: 1>, scalar_prefetch = 0 : i64, scratch_operands = 0 : i64, tpu.core_type = #tpu.core_type<tc>, window_params = [{transform_indices = @transform_0, window_bounds = array<i64: 16, 16>}, {pipeline_mode = #tpu.pipeline_mode<synchronous>, transform_indices = @transform_1, window_bounds = array<i64: 1, 16>}, {transform_indices = @transform_2, window_bounds = array<i64: 16, 8>}, {transform_indices = @transform_3, window_bounds = array<i64: 16, 8>}]} {
    %c0 = arith.constant 0 : index
    %c0_0 = arith.constant 0 : index
    %0 = vector.load %arg2[%c0, %c0_0] : memref<1x16xf32, #tpu.memory_space<vmem>>, vector<1x16xf32>
    %c0_1 = arith.constant 0 : index
    %c0_2 = arith.constant 0 : index
    %1 = vector.load %arg1[%c0_1, %c0_2] : memref<16x16xf32, #tpu.memory_space<vmem>>, vector<16x16xf32>
    %cst = arith.constant 2.000000e+00 : f32
    %2 = vector.broadcast %cst : f32 to vector<16x16xf32>
    %3 = arith.mulf %1, %2 : vector<16x16xf32>
    %4 = vector.broadcast %0 : vector<1x16xf32> to vector<16x16xf32>
    %5 = arith.subf %4, %3 : vector<16x16xf32>
    %cst_3 = arith.constant dense<0xFF800000> : vector<16xf32>
    %6 = vector.multi_reduction <maximumf>, %5, %cst_3 [1] : vector<16x16xf32> to vector<16xf32>
    %7 = vector.shape_cast %6 : vector<16xf32> to vector<16x1xf32>
    %8 = vector.broadcast %7 : vector<16x1xf32> to vector<16x16xf32>
    %9 = arith.subf %5, %8 : vector<16x16xf32>
    %10 = math.exp %9 : vector<16x16xf32>
    %cst_4 = arith.constant dense<0.000000e+00> : vector<16xf32>
    %11 = vector.multi_reduction <add>, %10, %cst_4 [1] : vector<16x16xf32> to vector<16xf32>
    %12 = vector.shape_cast %11 : vector<16xf32> to vector<16x1xf32>
    %13 = math.log %12 : vector<16x1xf32>
    %14 = arith.addf %7, %13 : vector<16x1xf32>
    %c0_5 = arith.constant 0 : index
    %c0_6 = arith.constant 0 : index
    %15 = vector.load %arg3[%c0_5, %c0_6] : memref<16x8xf32, #tpu.memory_space<vmem>>, vector<16x8xf32>
    %16 = vector.broadcast %14 : vector<16x1xf32> to vector<16x8xf32>
    %17 = arith.subf %15, %16 : vector<16x8xf32>
    %c0_7 = arith.constant 0 : index
    %c0_8 = arith.constant 0 : index
    %18 = vector.load %arg4[%c0_7, %c0_8] : memref<16x8xf32, #tpu.memory_space<vmem>>, vector<16x8xf32>
    tpu.vector_store %arg4[%c0_7, %c0_8], %17 {strides = array<i32>} : memref<16x8xf32, #tpu.memory_space<vmem>>, vector<16x8xf32>,
    return
  }
  func.func @transform_0(%arg0: i32) -> (i32, i32) {
    %c0_i32 = arith.constant 0 : i32
    %c0_i32_0 = arith.constant 0 : i32
    return %arg0, %c0_i32 : i32, i32
  }
  func.func @transform_1(%arg0: i32) -> (i32, i32) {
    %c0_i32 = arith.constant 0 : i32
    %c0_i32_0 = arith.constant 0 : i32
    %c0_i32_1 = arith.constant 0 : i32
    return %c0_i32, %c0_i32_0 : i32, i32
  }
  func.func @transform_2(%arg0: i32) -> (i32, i32) {
    %c0_i32 = arith.constant 0 : i32
    %c0_i32_0 = arith.constant 0 : i32
    return %arg0, %c0_i32 : i32, i32
  }
  func.func @transform_3(%arg0: i32) -> (i32, i32) {
    %c0_i32 = arith.constant 0 : i32
    %c0_i32_0 = arith.constant 0 : i32
    return %arg0, %c0_i32 : i32, i32
  }
}

</mosaic_0001>

<llo_original>
// kernel: tpu_custom_call.1
$region0: #{tpu_custom_call.1}
  #allocation0 [shape = 'u32[]', space=smem, size = 0x4, offset = 0x4, fixed_abs, tag = 'smem constant byte address 0x4 - core index']
  #allocation1 [shape = 'u32[144,128]{1,0:T(1,128)}', space=vmem, size = 0x12000, scoped, tag = 'internal scratch']
  %s0 = inlined_call_operand.vmem [shape: f32[16,16], index: 0, kind: input, shape index: {}]
  %s1 = inlined_call_operand.vmem [shape: f32[1,16], index: 1, kind: input, shape index: {}]
  %s2 = inlined_call_operand.vmem [shape: f32[16,8], index: 2, kind: input, shape index: {}]
  %s3 = inlined_call_operand.vmem [shape: f32[16,8], index: 3, kind: output, shape index: {}]
  %s4 = sld [smem:[#allocation0]]
  $region22: #{tpu_custom_call.1} parent=0
    _
  %s6 = ssub.s32 1, %s4
  %s7 = scalar_select 0, %s6, %s4
  // Predicated region
  $region2: #{tpu_custom_call.1} parent=0 // pred_check
    _
  $region3: #{tpu_custom_call.1} parent=0 // pred_check_branch
    %9 = sbr.rel (0) target = $region5
  $region4: #{tpu_custom_call.1} parent=0 // pred_region
    _
  $region5: #{tpu_custom_call.1} parent=0 // pred_fallthru
    _
  // Predicated region
  $region6: #{tpu_custom_call.1} parent=0 // pred_check
    _
  $region7: #{tpu_custom_call.1} parent=0 // pred_check_branch
    %11 = sbr.rel (0) target = $region9
  $region8: #{tpu_custom_call.1} parent=0 // pred_region
    _
  $region9: #{tpu_custom_call.1} parent=0 // pred_fallthru
    _
  // Predicated region
  $region10: #{tpu_custom_call.1} parent=0 // pred_check
    _
  $region11: #{tpu_custom_call.1} parent=0 // pred_check_branch
    %13 = sbr.rel (0) target = $region13
  $region12: #{tpu_custom_call.1} parent=0 // pred_region
    _
  $region13: #{tpu_custom_call.1} parent=0 // pred_fallthru
    _
  %v14 = vld [vmem:[%s1] sm:$0x1]
  %v15 = vld [vmem:[%s0] sm:$0xff]
  %v16 = vld [vmem:[%s0 + $0x8] sm:$0xff]
  %v17 = vmul.f32 %v15, 2.0
  %v18 = vmul.f32 %v16, 2.0
  %v20 = vlaneseq
  %v21 = vshrl.u32 %v20, 7
  %v22 = vsub.s32 0, %v21
  %v23 = vrot.slane %v14, %v22
  %v25 = vsub.f32 %v23, %v17
  %v26 = vsub.f32 %v23, %v18
  %vm27 = vcmask 130048
  %v28 = vsel %vm27, %v25, -inf
  %29 = vmax.xlane.f32.xlu0 %v28
  %v30 = vpop.xlane.xlu0 %29
  %v31 = vsel %vm27, %v26, -inf
  %32 = vmax.xlane.f32.xlu0 %v31
  %v33 = vpop.xlane.xlu0 %32
  %v34 = vsub.f32 %v25, %v30
  %v35 = vsub.f32 %v26, %v33
  %v36 = vmul.f32 %v34, 1.442695
  %v37 = vpow.pop %v36
  %v38 = vmul.f32 %v35, 1.442695
  %v39 = vpow.pop %v38
  %v40 = vsel %vm27, %v37, 0.0
  %41 = vadd.xlane.f32.xlu0 %v40
  %v42 = vpop.xlane.xlu0 %41
  %v43 = vsel %vm27, %v39, 0.0
  %44 = vadd.xlane.f32.xlu0 %v43
  %v45 = vpop.xlane.xlu0 %44
  %v46 = vlog2.pop %v42
  %v47 = vmul.f32 %v46, 0.6931472
  %v48 = vlog2.pop %v45
  %v49 = vmul.f32 %v48, 0.6931472
  %v50 = vadd.f32 %v30, %v47
  %v51 = vadd.f32 %v33, %v49
  %v52 = vld [vmem:[%s2] sm:$0xff]
  %v53 = vld [vmem:[%s2 + $0x8] sm:$0xff]
  %v54 = vsub.f32 %v52, %v50
  %v55 = vsub.f32 %v53, %v51
  %vm56 = vcmask 64512
  %57 = vst.msk [vmem:[%s3] sm:$0xff] %vm56, %v54
  %58 = vst.msk [vmem:[%s3 + $0x8] sm:$0xff] %vm56, %v55
  // Predicated region
  $region14: #{tpu_custom_call.1} parent=0 // pred_check
    _
  $region15: #{tpu_custom_call.1} parent=0 // pred_check_branch
    %60 = sbr.rel (0) target = $region17
  $region16: #{tpu_custom_call.1} parent=0 // pred_region
    _
  $region17: #{tpu_custom_call.1} parent=0 // pred_fallthru
    _
  // Predicated region
  $region18: #{tpu_custom_call.1} parent=0 // pred_check
    _
  $region19: #{tpu_custom_call.1} parent=0 // pred_check_branch
    %62 = sbr.rel (0) target = $region21
  $region20: #{tpu_custom_call.1} parent=0 // pred_region
    _
  $region21: #{tpu_custom_call.1} parent=0 // pred_fallthru
    _

</llo_original>
